<compile_context>
chip_gen: v6e
topology: v6e:2x2x1
jax: 0.10.0
libtpu: 0.0.40
codegen_flags: <defaults>
</compile_context>

<pallas_src>
import jax
import jax.numpy as jnp
from jax.experimental import pallas as pl
from jax.experimental.pallas import tpu as pltpu

HIDDEN = 300
LANE = 128
LEAKY_SLOPE = 0.01          # torch.nn.LeakyReLU default negative_slope
MAX_TILE_B = 4096           # upper bound on batch tile (rows)
VMEM_BUDGET = 28 * 1024 * 1024   # conservative working-set budget (v7x-safe)
VMEM_LIMIT = 32 * 1024 * 1024    # explicit scoped-VMEM limit (safe on v5e/v6e/v7x)


def _round_up(n, m):
    return (n + m - 1) // m * m


def _mlp_kernel(x_ref, w1_ref, b1_ref, w2_ref, b2_ref, o_ref):
    # Linear 1: x @ W1 on the MXU (f32 accumulation) + bias, LeakyReLU on the VPU.
    h = jnp.dot(x_ref[...], w1_ref[...], preferred_element_type=jnp.float32)
    h = h + b1_ref[...]                      # (1, hid_pad) broadcasts over batch
    h = jnp.maximum(h, LEAKY_SLOPE * h)      # LeakyReLU as mul+max (cheaper than cmp+select)
    # Linear 2: h @ W2 on the MXU (f32 accumulation) + bias.
    h = h.astype(w2_ref.dtype)
    out = jnp.dot(h, w2_ref[...], preferred_element_type=jnp.float32)
    out = out + b2_ref[...]                  # (1, out_dim)
    o_ref[...] = out.astype(o_ref.dtype)


def prepare_params(w1, b1, w2, b2, *, compute_dtype=jnp.float32):
    """Pad parameters ONCE (outside the per-call forward path).

    w1: (input_dim, 300); b1: (300,); w2: (300, output_dim); b2: (output_dim,).
    compute_dtype: jnp.float32 or jnp.bfloat16 (bf16 is MXU-native on all gens;
    LeakyReLU and accumulation stay in f32).

    Hidden is padded 300 -> 384 (lane-dense intermediate, exact: LeakyReLU(0)=0
    and zero rows of W2 contribute nothing). The output dim is left UNPADDED.
    """
    input_dim, hidden = w1.shape
    hidden2, out_dim = w2.shape
    assert hidden == hidden2 and b1.shape == (hidden,) and b2.shape == (out_dim,)
    hid_pad = _round_up(hidden, LANE)        # 300 -> 384
    w1p = jnp.zeros((input_dim, hid_pad), compute_dtype).at[:, :hidden].set(
        w1.astype(compute_dtype))
    b1p = jnp.zeros((1, hid_pad), jnp.float32).at[0, :hidden].set(
        b1.astype(jnp.float32))
    w2p = jnp.zeros((hid_pad, out_dim), compute_dtype).at[:hidden, :].set(
        w2.astype(compute_dtype))
    b2p = b2.astype(jnp.float32).reshape(1, out_dim)
    return (w1p, b1p, w2p, b2p)


def _pick_tile_b(B, input_dim, hid_pad, out_dim, in_itemsize, out_itemsize):
    # Resident params (assume 2x buffers even for constant-index blocks, to be safe).
    resident = 2 * in_itemsize * (input_dim * hid_pad + hid_pad
                                  + hid_pad * out_dim + out_dim)
    # Per batch-row VMEM: double-buffered x tile + out tile, plus f32 intermediate h.
    per_row = (2 * input_dim * in_itemsize
               + 2 * out_dim * out_itemsize
               + hid_pad * 4)
    vmem_cap = max(8, (VMEM_BUDGET - resident) // max(per_row, 1))
    tile = min(MAX_TILE_B, vmem_cap, _round_up(B, 8))
    # Keep >= 2 grid steps when the batch warrants it, so both v7x TCs get work
    # (the grid axis is marked "parallel"). Costs ~0.35 us on single-TC chips.
    if B >= 64 and pl.cdiv(B, tile) < 2:
        tile = pl.cdiv(B, 2)
    return max(8, _round_up(int(tile), 8))


def bottom_model_decoder_layer2(x, params, *, tile_b=None, out_dtype=None):
    """Forward pass.  x: (B, input_dim); params: output of prepare_params."""
    w1p, b1p, w2p, b2p = params
    B, input_dim = x.shape
    assert w1p.shape[0] == input_dim
    hid_pad = w1p.shape[1]
    out_dim = w2p.shape[1]
    compute_dtype = w1p.dtype
    if out_dtype is None:
        out_dtype = x.dtype

    xp = x.astype(compute_dtype)             # bf16 streaming halves x HBM traffic

    if tile_b is None:
        tile_b = _pick_tile_b(B, input_dim, hid_pad, out_dim,
                              jnp.dtype(compute_dtype).itemsize,
                              jnp.dtype(out_dtype).itemsize)
    tile_b = max(8, _round_up(int(tile_b), 8))

    # No batch padding: Pallas masks writes of the trailing partial block;
    # garbage OOB rows only feed outputs that are discarded (row-wise LHS matmul).
    grid = (pl.cdiv(B, tile_b),)

    return pl.pallas_call(
        _mlp_kernel,
        out_shape=jax.ShapeDtypeStruct((B, out_dim), out_dtype),
        grid=grid,
        in_specs=[
            pl.BlockSpec((tile_b, input_dim), lambda i: (i, 0)),   # x: streamed
            pl.BlockSpec((input_dim, hid_pad), lambda i: (0, 0)),  # w1: resident
            pl.BlockSpec((1, hid_pad),        lambda i: (0, 0)),   # b1: resident
            pl.BlockSpec((hid_pad, out_dim),  lambda i: (0, 0)),   # w2: resident
            pl.BlockSpec((1, out_dim),        lambda i: (0, 0)),   # b2: resident
        ],
        out_specs=pl.BlockSpec((tile_b, out_dim), lambda i: (i, 0)),
        compiler_params=pltpu.CompilerParams(
            dimension_semantics=("parallel",),      # megacore sharding on v7x
            vmem_limit_bytes=VMEM_LIMIT),
    )(xp, w1p, b1p, w2p, b2p)


def init_params(key, input_dim, output_dim):
    """Deterministic init mimicking torch.nn.Linear default:
       U(-1/sqrt(fan_in), 1/sqrt(fan_in)) for weight and bias.  Weights are stored
       pre-transposed as [in, out]."""
    k1, k2, k3, k4 = jax.random.split(key, 4)
    bound1 = 1.0 / jnp.sqrt(jnp.float32(input_dim))
    bound2 = 1.0 / jnp.sqrt(jnp.float32(HIDDEN))
    w1 = jax.random.uniform(k1, (input_dim, HIDDEN), jnp.float32, -bound1, bound1)
    b1 = jax.random.uniform(k2, (HIDDEN,), jnp.float32, -bound1, bound1)
    w2 = jax.random.uniform(k3, (HIDDEN, output_dim), jnp.float32, -bound2, bound2)
    b2 = jax.random.uniform(k4, (output_dim,), jnp.float32, -bound2, bound2)
    return w1, b1, w2, b2


def reference_forward(x, w1, b1, w2, b2):
    h = x @ w1 + b1
    h = jnp.where(h > 0, h, LEAKY_SLOPE * h)
    return h @ w2 + b2


if __name__ == "__main__":
    batch, input_dim, output_dim = 8, 32, 16

    key = jax.random.PRNGKey(0)
    kx, kp = jax.random.split(key)
    x = jax.random.normal(kx, (batch, input_dim), jnp.float32)
    w1, b1, w2, b2 = init_params(kp, input_dim, output_dim)

    # Pad parameters once; reuse across every forward call.
    params_f32 = prepare_params(w1, b1, w2, b2, compute_dtype=jnp.float32)

    # Single-tile path (small batch).
    out = jax.block_until_ready(bottom_model_decoder_layer2(x, params_f32))
    ref = reference_forward(x, w1, b1, w2, b2)
    assert out.shape == (batch, output_dim)
    assert jnp.allclose(out, ref, atol=1e-4, rtol=1e-4), "mismatch vs JAX reference"

    # Multi-step grid with a trailing partial batch block (no batch padding copy).
    x2 = jax.random.normal(kx, (300, input_dim), jnp.float32)
    ref2 = reference_forward(x2, w1, b1, w2, b2)
    out2 = jax.block_until_ready(
        bottom_model_decoder_layer2(x2, params_f32, tile_b=128))
    assert out2.shape == (300, output_dim)
    assert jnp.allclose(out2, ref2, atol=1e-4, rtol=1e-4), "mismatch (partial block)"

    # Auto tile selection (keeps >= 2 parallel grid steps for v7x megacore).
    out3 = jax.block_until_ready(bottom_model_decoder_layer2(x2, params_f32))
    assert jnp.allclose(out3, ref2, atol=1e-4, rtol=1e-4), "mismatch (auto tile)"

    # bf16 streaming path (f32 accumulation) -- looser tolerance, works on all gens.
    params_bf16 = prepare_params(w1, b1, w2, b2, compute_dtype=jnp.bfloat16)
    out4 = jax.block_until_ready(
        bottom_model_decoder_layer2(x2, params_bf16, out_dtype=jnp.float32))
    assert jnp.allclose(out4, ref2, atol=3e-2, rtol=3e-2), "mismatch (bf16 path)"

    print("KERNEL_OK")
</pallas_src>

<mosaic_0001>
module attributes {stable_mosaic.version = 11 : i64} {
  func.func @_mlp_kernel(%arg0: i32, %arg1: memref<8x32xf32, #tpu.memory_space<vmem>>, %arg2: memref<32x384xf32, #tpu.memory_space<vmem>>, %arg3: memref<1x384xf32, #tpu.memory_space<vmem>>, %arg4: memref<384x16xf32, #tpu.memory_space<vmem>>, %arg5: memref<1x16xf32, #tpu.memory_space<vmem>>, %arg6: memref<8x16xf32, #tpu.memory_space<vmem>>) attributes {dimension_semantics = [#tpu.dimension_semantics<parallel>], iteration_bounds = array<i64: 1>, scalar_prefetch = 0 : i64, scratch_operands = 0 : i64, tpu.core_type = #tpu.core_type<tc>, window_params = [{transform_indices = @transform_0, window_bounds = array<i64: 8, 32>}, {pipeline_mode = #tpu.pipeline_mode<synchronous>, transform_indices = @transform_1, window_bounds = array<i64: 32, 384>}, {pipeline_mode = #tpu.pipeline_mode<synchronous>, transform_indices = @transform_2, window_bounds = array<i64: 1, 384>}, {pipeline_mode = #tpu.pipeline_mode<synchronous>, transform_indices = @transform_3, window_bounds = array<i64: 384, 16>}, {pipeline_mode = #tpu.pipeline_mode<synchronous>, transform_indices = @transform_4, window_bounds = array<i64: 1, 16>}, {transform_indices = @transform_5, window_bounds = array<i64: 8, 16>}]} {
    %c0 = arith.constant 0 : index
    %c0_0 = arith.constant 0 : index
    %0 = vector.load %arg1[%c0, %c0_0] : memref<8x32xf32, #tpu.memory_space<vmem>>, vector<8x32xf32>
    %c0_1 = arith.constant 0 : index
    %c0_2 = arith.constant 0 : index
    %1 = vector.load %arg2[%c0_1, %c0_2] : memref<32x384xf32, #tpu.memory_space<vmem>>, vector<32x384xf32>
    %cst = arith.constant dense<0.000000e+00> : vector<8x384xf32>
    %2 = tpu.matmul %0, %1, %cst {dimension_numbers = #tpu.dot_dimension_numbers<[1], [0], [0], [1], [0, 0, 1, 1], [], []>} : vector<8x32xf32>, vector<32x384xf32>, vector<8x384xf32> -> vector<8x384xf32>
    %c0_3 = arith.constant 0 : index
    %c0_4 = arith.constant 0 : index
    %3 = vector.load %arg3[%c0_3, %c0_4] : memref<1x384xf32, #tpu.memory_space<vmem>>, vector<1x384xf32>
    %4 = vector.broadcast %3 : vector<1x384xf32> to vector<8x384xf32>
    %5 = arith.addf %2, %4 : vector<8x384xf32>
    %cst_5 = arith.constant 0.00999999977 : f32
    %6 = vector.broadcast %cst_5 : f32 to vector<8x384xf32>
    %7 = arith.mulf %6, %5 : vector<8x384xf32>
    %8 = arith.maximumf %5, %7 : vector<8x384xf32>
    %c0_6 = arith.constant 0 : index
    %c0_7 = arith.constant 0 : index
    %9 = vector.load %arg4[%c0_6, %c0_7] : memref<384x16xf32, #tpu.memory_space<vmem>>, vector<384x16xf32>
    %cst_8 = arith.constant dense<0.000000e+00> : vector<8x16xf32>
    %10 = tpu.matmul %8, %9, %cst_8 {dimension_numbers = #tpu.dot_dimension_numbers<[1], [0], [0], [1], [0, 0, 1, 1], [], []>} : vector<8x384xf32>, vector<384x16xf32>, vector<8x16xf32> -> vector<8x16xf32>
    %c0_9 = arith.constant 0 : index
    %c0_10 = arith.constant 0 : index
    %11 = vector.load %arg5[%c0_9, %c0_10] : memref<1x16xf32, #tpu.memory_space<vmem>>, vector<1x16xf32>
    %12 = vector.broadcast %11 : vector<1x16xf32> to vector<8x16xf32>
    %13 = arith.addf %10, %12 : vector<8x16xf32>
    %c0_11 = arith.constant 0 : index
    %c0_12 = arith.constant 0 : index
    %14 = vector.load %arg6[%c0_11, %c0_12] : memref<8x16xf32, #tpu.memory_space<vmem>>, vector<8x16xf32>
    tpu.vector_store %arg6[%c0_11, %c0_12], %13 {strides = array<i32>} : memref<8x16xf32, #tpu.memory_space<vmem>>, vector<8x16xf32>,
    return
  }
  func.func @transform_0(%arg0: i32) -> (i32, i32) {
    %c0_i32 = arith.constant 0 : i32
    %c0_i32_0 = arith.constant 0 : i32
    return %arg0, %c0_i32 : i32, i32
  }
  func.func @transform_1(%arg0: i32) -> (i32, i32) {
    %c0_i32 = arith.constant 0 : i32
    %c0_i32_0 = arith.constant 0 : i32
    %c0_i32_1 = arith.constant 0 : i32
    return %c0_i32, %c0_i32_0 : i32, i32
  }
  func.func @transform_2(%arg0: i32) -> (i32, i32) {
    %c0_i32 = arith.constant 0 : i32
    %c0_i32_0 = arith.constant 0 : i32
    %c0_i32_1 = arith.constant 0 : i32
    return %c0_i32, %c0_i32_0 : i32, i32
  }
  func.func @transform_3(%arg0: i32) -> (i32, i32) {
    %c0_i32 = arith.constant 0 : i32
    %c0_i32_0 = arith.constant 0 : i32
    %c0_i32_1 = arith.constant 0 : i32
    return %c0_i32, %c0_i32_0 : i32, i32
  }
  func.func @transform_4(%arg0: i32) -> (i32, i32) {
    %c0_i32 = arith.constant 0 : i32
    %c0_i32_0 = arith.constant 0 : i32
    %c0_i32_1 = arith.constant 0 : i32
    return %c0_i32, %c0_i32_0 : i32, i32
  }
  func.func @transform_5(%arg0: i32) -> (i32, i32) {
    %c0_i32 = arith.constant 0 : i32
    %c0_i32_0 = arith.constant 0 : i32
    return %arg0, %c0_i32 : i32, i32
  }
}

</mosaic_0001>

<llo_original>
// kernel: tpu_custom_call.1
$region0: #{tpu_custom_call.1}
  #allocation0 [shape = 'u32[]', space=smem, size = 0x4, offset = 0x4, fixed_abs, tag = 'smem constant byte address 0x4 - core index']
  #allocation1 [shape = 'u32[144,128]{1,0:T(1,128)}', space=vmem, size = 0x12000, scoped, tag = 'internal scratch']
  %s0 = inlined_call_operand.vmem [shape: f32[8,32], index: 0, kind: input, shape index: {}]
  %s1 = inlined_call_operand.vmem [shape: f32[32,384], index: 1, kind: input, shape index: {}]
  %s2 = inlined_call_operand.vmem [shape: f32[1,384], index: 2, kind: input, shape index: {}]
  %s3 = inlined_call_operand.vmem [shape: f32[384,16], index: 3, kind: input, shape index: {}]
  %s4 = inlined_call_operand.vmem [shape: f32[1,16], index: 4, kind: input, shape index: {}]
  %s5 = inlined_call_operand.hbm [shape: f32[8,16], index: 5, kind: output, shape index: {}]
  %s6 = sld [smem:[#allocation0]]
  $region30: #{tpu_custom_call.1} parent=0
    _
  %s8 = ssub.s32 1, %s6
  %s9 = scalar_select 0, %s8, %s6
  $region1: #{tpu_custom_call.1} parent=0
    #allocation2 [shape = 'u8[4096]{0}', space=vmem, size = 0x1000, scoped, tag = 'output window, operand 0, single buffered']
    #allocation3 [shape = 's32[1]{0}', space=sflag, size = 0x4, scoped, tag = 'scoped memory for tpu_custom_call.1']
    %10 = vsyncpa [#allocation3], 0
    // Predicated region
    $region2: #{tpu_custom_call.1} parent=1 // pred_check
      _
    $region3: #{tpu_custom_call.1} parent=1 // pred_check_branch
      %12 = sbr.rel (0) target = $region5
    $region4: #{tpu_custom_call.1} parent=1 // pred_region
      _
    $region5: #{tpu_custom_call.1} parent=1 // pred_fallthru
      _
    // Predicated region
    $region6: #{tpu_custom_call.1} parent=1 // pred_check
      _
    $region7: #{tpu_custom_call.1} parent=1 // pred_check_branch
      %14 = sbr.rel (0) target = $region9
    $region8: #{tpu_custom_call.1} parent=1 // pred_region
      _
    $region9: #{tpu_custom_call.1} parent=1 // pred_fallthru
      _
    // Predicated region
    $region10: #{tpu_custom_call.1} parent=1 // pred_check
      _
    $region11: #{tpu_custom_call.1} parent=1 // pred_check_branch
      %16 = sbr.rel (0) target = $region13
    $region12: #{tpu_custom_call.1} parent=1 // pred_region
      _
    $region13: #{tpu_custom_call.1} parent=1 // pred_fallthru
      _
    // Predicated region
    $region14: #{tpu_custom_call.1} parent=1 // pred_check
      _
    $region15: #{tpu_custom_call.1} parent=1 // pred_check_branch
      %18 = sbr.rel (0) target = $region17
    $region16: #{tpu_custom_call.1} parent=1 // pred_region
      _
    $region17: #{tpu_custom_call.1} parent=1 // pred_fallthru
      _
    // Predicated region
    $region18: #{tpu_custom_call.1} parent=1 // pred_check
      _
    $region19: #{tpu_custom_call.1} parent=1 // pred_check_branch
      %20 = sbr.rel (0) target = $region21
    $region20: #{tpu_custom_call.1} parent=1 // pred_region
      _
    $region21: #{tpu_custom_call.1} parent=1 // pred_fallthru
      _
    %v21 = vld [vmem:[%s0] sm:$0xff]
    %v22 = vld [vmem:[%s1] sm:$0xff]
    %v23 = vld [vmem:[%s1 + $0x8] sm:$0xff]
    %v24 = vld [vmem:[%s1 + $0x10] sm:$0xff]
    %v25 = vld [vmem:[%s1 + $0x18] sm:$0xff]
    %v26 = vld [vmem:[%s1 + $0x20] sm:$0xff]
    %v27 = vld [vmem:[%s1 + $0x28] sm:$0xff]
    %v28 = vld [vmem:[%s1 + $0x30] sm:$0xff]
    %v29 = vld [vmem:[%s1 + $0x38] sm:$0xff]
    %v30 = vld [vmem:[%s1 + $0x40] sm:$0xff]
    %v31 = vld [vmem:[%s1 + $0x48] sm:$0xff]
    %v32 = vld [vmem:[%s1 + $0x50] sm:$0xff]
    %v33 = vld [vmem:[%s1 + $0x58] sm:$0xff]
    %v34 = vld [vmem:[%s2] sm:$0x7]
    %v36 = vlaneseq
    %v37 = vshrl.u32 %v36, 7
    %v38 = vsub.s32 0, %v37
    %v39 = vrot.slane %v34, %v38
    %v40 = vlaneseq
    %v41 = vshrl.u32 %v40, 7
    %v42 = vsub.s32 1, %v41
    %v43 = vrot.slane %v34, %v42
    %v44 = vlaneseq
    %v45 = vshrl.u32 %v44, 7
    %v46 = vsub.s32 2, %v45
    %v47 = vrot.slane %v34, %v46
    %vm51 = vcmask 261120
    %v53 = vsel %vm51, %v21, 0
    %55 = vmatprep.subr.mxu0 0.0
    %56 = vmatpush1.msra.mxu0 0.0
    %57 = vmatprep.subr.mxu0 0.0
    %58 = vmatpush1.msra.mxu0 0.0
    %59 = vmatprep.subr.mxu0 0.0
    %60 = vmatpush1.msra.mxu0 0.0
    %61 = vmatprep.subr.mxu0 0.0
    %62 = vmatpush1.msra.mxu0 0.0
    %63 = vmatprep.subr.mxu0 0.0
    %64 = vmatpush1.msra.mxu0 0.0
    %65 = vmatprep.subr.mxu0 0.0
    %66 = vmatpush1.msra.mxu0 0.0
    %67 = vmatprep.subr.mxu0 0.0
    %68 = vmatpush1.msra.mxu0 0.0
    %69 = vmatprep.subr.mxu0 0.0
    %70 = vmatpush1.msra.mxu0 0.0
    %71 = vmatprep.subr.mxu0 0.0
    %72 = vmatpush1.msra.mxu0 0.0
    %73 = vmatprep.subr.mxu0 0.0
    %74 = vmatpush1.msra.mxu0 0.0
    %75 = vmatprep.subr.mxu0 0.0
    %76 = vmatpush1.msra.mxu0 0.0
    %77 = vmatprep.subr.mxu0 0.0
    %78 = vmatpush1.msra.mxu0 0.0
    %79 = vmatprep.subr.mxu0 %v32
    %80 = vmatpush1.msra.mxu0 %v31
    %81 = vmatprep.subr.mxu0 %v29
    %82 = vmatpush1.msra.mxu0 %v28
    %83 = vmatprep.subr.mxu0 %v26
    %84 = vmatpush1.msra.mxu0 %v25
    %85 = vmatprep.subr.mxu0 %v23
    %86 = vmatpush1.msra.mxu0 %v22
    %87 = vmatprep.subr.mxu0 0.0
    %88 = vmatpush2.msra.mxu0 0.0
    %89 = vmatprep.subr.mxu0 0.0
    %90 = vmatpush2.msra.mxu0 0.0
    %91 = vmatprep.subr.mxu0 0.0
    %92 = vmatpush2.msra.mxu0 0.0
    %93 = vmatprep.subr.mxu0 0.0
    %94 = vmatpush2.msra.mxu0 0.0
    %95 = vmatprep.subr.mxu0 0.0
    %96 = vmatpush2.msra.mxu0 0.0
    %97 = vmatprep.subr.mxu0 0.0
    %98 = vmatpush2.msra.mxu0 0.0
    %99 = vmatprep.subr.mxu0 0.0
    %100 = vmatpush2.msra.mxu0 0.0
    %101 = vmatprep.subr.mxu0 0.0
    %102 = vmatpush2.msra.mxu0 0.0
    %103 = vmatprep.subr.mxu0 0.0
    %104 = vmatpush2.msra.mxu0 0.0
    %105 = vmatprep.subr.mxu0 0.0
    %106 = vmatpush2.msra.mxu0 0.0
    %107 = vmatprep.subr.mxu0 0.0
    %108 = vmatpush2.msra.mxu0 0.0
    %109 = vmatprep.subr.mxu0 0.0
    %110 = vmatpush2.msra.mxu0 0.0
    %111 = vmatprep.subr.mxu0 0.0
    %112 = vmatpush2.msra.mxu0 0.0
    %113 = vmatprep.subr.mxu0 0.0
    %114 = vmatpush2.msra.mxu0 0.0
    %115 = vmatprep.subr.mxu0 0.0
    %116 = vmatpush2.msra.mxu0 0.0
    %117 = vmatprep.subr.mxu0 0.0
    %118 = vmatpush2.msra.mxu0 0.0
    %119 = vmatprep.mubr.f32.mxu0 0.0
    %120 = vmatmul.mubr.f32.gmra.mxu0 %v53
    %v121 = vpop.f32.mrf.mxu0
    %v122 = vadd.f32 %v39, %v121
    %v123 = vpop.f32.mrf.mxu0
    %v124 = vadd.f32 %v43, %v123
    %125 = vdwg.mxu0
    %126 = vmatprep.subr.mxu0 0.0
    %127 = vmatpush1.msra.mxu0 0.0
    %128 = vmatprep.subr.mxu0 0.0
    %129 = vmatpush1.msra.mxu0 0.0
    %130 = vmatprep.subr.mxu0 0.0
    %131 = vmatpush1.msra.mxu0 0.0
    %132 = vmatprep.subr.mxu0 0.0
    %133 = vmatpush1.msra.mxu0 0.0
    %134 = vmatprep.subr.mxu0 0.0
    %135 = vmatpush1.msra.mxu0 0.0
    %136 = vmatprep.subr.mxu0 0.0
    %137 = vmatpush1.msra.mxu0 0.0
    %138 = vmatprep.subr.mxu0 0.0
    %139 = vmatpush1.msra.mxu0 0.0
    %140 = vmatprep.subr.mxu0 0.0
    %141 = vmatpush1.msra.mxu0 0.0
    %142 = vmatprep.subr.mxu0 0.0
    %143 = vmatpush1.msra.mxu0 0.0
    %144 = vmatprep.subr.mxu0 0.0
    %145 = vmatpush1.msra.mxu0 0.0
    %146 = vmatprep.subr.mxu0 0.0
    %147 = vmatpush1.msra.mxu0 0.0
    %148 = vmatprep.subr.mxu0 0.0
    %149 = vmatpush1.msra.mxu0 0.0
    %150 = vmatprep.subr.mxu0 0.0
    %151 = vmatpush1.msra.mxu0 %v33
    %152 = vmatprep.subr.mxu0 0.0
    %153 = vmatpush1.msra.mxu0 %v30
    %154 = vmatprep.subr.mxu0 0.0
    %155 = vmatpush1.msra.mxu0 %v27
    %156 = vmatprep.subr.mxu0 0.0
    %157 = vmatpush1.msra.mxu0 %v24
    %158 = vmatprep.subr.mxu0 0.0
    %159 = vmatpush2.msra.mxu0 0.0
    %160 = vmatprep.subr.mxu0 0.0
    %161 = vmatpush2.msra.mxu0 0.0
    %162 = vmatprep.subr.mxu0 0.0
    %163 = vmatpush2.msra.mxu0 0.0
    %164 = vmatprep.subr.mxu0 0.0
    %165 = vmatpush2.msra.mxu0 0.0
    %166 = vmatprep.subr.mxu0 0.0
    %167 = vmatpush2.msra.mxu0 0.0
    %168 = vmatprep.subr.mxu0 0.0
    %169 = vmatpush2.msra.mxu0 0.0
    %170 = vmatprep.subr.mxu0 0.0
    %171 = vmatpush2.msra.mxu0 0.0
    %172 = vmatprep.subr.mxu0 0.0
    %173 = vmatpush2.msra.mxu0 0.0
    %174 = vmatprep.subr.mxu0 0.0
    %175 = vmatpush2.msra.mxu0 0.0
    %176 = vmatprep.subr.mxu0 0.0
    %177 = vmatpush2.msra.mxu0 0.0
    %178 = vmatprep.subr.mxu0 0.0
    %179 = vmatpush2.msra.mxu0 0.0
    %180 = vmatprep.subr.mxu0 0.0
    %181 = vmatpush2.msra.mxu0 0.0
    %182 = vmatprep.subr.mxu0 0.0
    %183 = vmatpush2.msra.mxu0 0.0
    %184 = vmatprep.subr.mxu0 0.0
    %185 = vmatpush2.msra.mxu0 0.0
    %186 = vmatprep.subr.mxu0 0.0
    %187 = vmatpush2.msra.mxu0 0.0
    %188 = vmatprep.subr.mxu0 0.0
    %189 = vmatpush2.msra.mxu0 0.0
    %190 = vmatprep.mubr.f32.mxu0 0.0
    %191 = vmatmul.mubr.f32.gmra.mxu0 %v53
    %v192 = vpop.f32.mrf.mxu0
    %v193 = vadd.f32 %v47, %v192
    %v194 = vpop.f32.mrf.mxu0
    %195 = vdwg.mxu0
    %v196 = vmul.f32 %v122, 0.01
    %v197 = vmul.f32 %v124, 0.01
    %v198 = vmul.f32 %v193, 0.01
    %v199 = vmax.f32 %v122, %v196
    %v200 = vmax.f32 %v124, %v197
    %v201 = vmax.f32 %v193, %v198
    %v202 = vld [vmem:[%s3] sm:$0xff]
    %v203 = vld [vmem:[%s3 + $0x8] sm:$0xff]
    %v204 = vld [vmem:[%s3 + $0x10] sm:$0xff]
    %v205 = vld [vmem:[%s3 + $0x18] sm:$0xff]
    %v206 = vld [vmem:[%s3 + $0x20] sm:$0xff]
    %v207 = vld [vmem:[%s3 + $0x28] sm:$0xff]
    %v208 = vld [vmem:[%s3 + $0x30] sm:$0xff]
    %v209 = vld [vmem:[%s3 + $0x38] sm:$0xff]
    %v210 = vld [vmem:[%s3 + $0x40] sm:$0xff]
    %v211 = vld [vmem:[%s3 + $0x48] sm:$0xff]
    %v212 = vld [vmem:[%s3 + $0x50] sm:$0xff]
    %v213 = vld [vmem:[%s3 + $0x58] sm:$0xff]
    %v214 = vld [vmem:[%s3 + $0x60] sm:$0xff]
    %v215 = vld [vmem:[%s3 + $0x68] sm:$0xff]
    %v216 = vld [vmem:[%s3 + $0x70] sm:$0xff]
    %v217 = vld [vmem:[%s3 + $0x78] sm:$0xff]
    %v218 = vld [vmem:[%s3 + $0x80] sm:$0xff]
    %v219 = vld [vmem:[%s3 + $0x88] sm:$0xff]
    %v220 = vld [vmem:[%s3 + $0x90] sm:$0xff]
    %v221 = vld [vmem:[%s3 + $0x98] sm:$0xff]
    %v222 = vld [vmem:[%s3 + $0xa0] sm:$0xff]
    %v223 = vld [vmem:[%s3 + $0xa8] sm:$0xff]
    %v224 = vld [vmem:[%s3 + $0xb0] sm:$0xff]
    %v225 = vld [vmem:[%s3 + $0xb8] sm:$0xff]
    %v226 = vld [vmem:[%s3 + $0xc0] sm:$0xff]
    %v227 = vld [vmem:[%s3 + $0xc8] sm:$0xff]
    %v228 = vld [vmem:[%s3 + $0xd0] sm:$0xff]
    %v229 = vld [vmem:[%s3 + $0xd8] sm:$0xff]
    %v230 = vld [vmem:[%s3 + $0xe0] sm:$0xff]
    %v231 = vld [vmem:[%s3 + $0xe8] sm:$0xff]
    %v232 = vld [vmem:[%s3 + $0xf0] sm:$0xff]
    %v233 = vld [vmem:[%s3 + $0xf8] sm:$0xff]
    %v234 = vld [vmem:[%s3 + $0x100] sm:$0xff]
    %v235 = vld [vmem:[%s3 + $0x108] sm:$0xff]
    %v236 = vld [vmem:[%s3 + $0x110] sm:$0xff]
    %v237 = vld [vmem:[%s3 + $0x118] sm:$0xff]
    %v238 = vld [vmem:[%s3 + $0x120] sm:$0xff]
    %v239 = vld [vmem:[%s3 + $0x128] sm:$0xff]
    %v240 = vld [vmem:[%s3 + $0x130] sm:$0xff]
    %v241 = vld [vmem:[%s3 + $0x138] sm:$0xff]
    %v242 = vld [vmem:[%s3 + $0x140] sm:$0xff]
    %v243 = vld [vmem:[%s3 + $0x148] sm:$0xff]
    %v244 = vld [vmem:[%s3 + $0x150] sm:$0xff]
    %v245 = vld [vmem:[%s3 + $0x158] sm:$0xff]
    %v246 = vld [vmem:[%s3 + $0x160] sm:$0xff]
    %v247 = vld [vmem:[%s3 + $0x168] sm:$0xff]
    %v248 = vld [vmem:[%s3 + $0x170] sm:$0xff]
    %v249 = vld [vmem:[%s3 + $0x178] sm:$0xff]
    %v250 = vld [vmem:[%s4] sm:$0x1]
    %v252 = vlaneseq
    %v253 = vshrl.u32 %v252, 7
    %v254 = vsub.s32 0, %v253
    %v255 = vrot.slane %v250, %v254
    %257 = vmatprep.subr.mxu0 0.0
    %258 = vmatpush1.msra.mxu0 %v217
    %259 = vmatprep.subr.mxu0 0.0
    %260 = vmatpush1.msra.mxu0 %v216
    %261 = vmatprep.subr.mxu0 0.0
    %262 = vmatpush1.msra.mxu0 %v215
    %263 = vmatprep.subr.mxu0 0.0
    %264 = vmatpush1.msra.mxu0 %v214
    %265 = vmatprep.subr.mxu0 0.0
    %266 = vmatpush1.msra.mxu0 %v213
    %267 = vmatprep.subr.mxu0 0.0
    %268 = vmatpush1.msra.mxu0 %v212
    %269 = vmatprep.subr.mxu0 0.0
    %270 = vmatpush1.msra.mxu0 %v211
    %271 = vmatprep.subr.mxu0 0.0
    %272 = vmatpush1.msra.mxu0 %v210
    %273 = vmatprep.subr.mxu0 0.0
    %274 = vmatpush1.msra.mxu0 %v209
    %275 = vmatprep.subr.mxu0 0.0
    %276 = vmatpush1.msra.mxu0 %v208
    %277 = vmatprep.subr.mxu0 0.0
    %278 = vmatpush1.msra.mxu0 %v207
    %279 = vmatprep.subr.mxu0 0.0
    %280 = vmatpush1.msra.mxu0 %v206
    %281 = vmatprep.subr.mxu0 0.0
    %282 = vmatpush1.msra.mxu0 %v205
    %283 = vmatprep.subr.mxu0 0.0
    %284 = vmatpush1.msra.mxu0 %v204
    %285 = vmatprep.subr.mxu0 0.0
    %286 = vmatpush1.msra.mxu0 %v203
    %287 = vmatprep.subr.mxu0 0.0
    %288 = vmatpush1.msra.mxu0 %v202
    %289 = vmatprep.subr.mxu0 0.0
    %290 = vmatpush2.msra.mxu0 %v233
    %291 = vmatprep.subr.mxu0 0.0
    %292 = vmatpush2.msra.mxu0 %v232
    %293 = vmatprep.subr.mxu0 0.0
    %294 = vmatpush2.msra.mxu0 %v231
    %295 = vmatprep.subr.mxu0 0.0
    %296 = vmatpush2.msra.mxu0 %v230
    %297 = vmatprep.subr.mxu0 0.0
    %298 = vmatpush2.msra.mxu0 %v229
    %299 = vmatprep.subr.mxu0 0.0
    %300 = vmatpush2.msra.mxu0 %v228
    %301 = vmatprep.subr.mxu0 0.0
    %302 = vmatpush2.msra.mxu0 %v227
    %303 = vmatprep.subr.mxu0 0.0
    %304 = vmatpush2.msra.mxu0 %v226
    %305 = vmatprep.subr.mxu0 0.0
    %306 = vmatpush2.msra.mxu0 %v225
    %307 = vmatprep.subr.mxu0 0.0
    %308 = vmatpush2.msra.mxu0 %v224
    %309 = vmatprep.subr.mxu0 0.0
    %310 = vmatpush2.msra.mxu0 %v223
    %311 = vmatprep.subr.mxu0 0.0
    %312 = vmatpush2.msra.mxu0 %v222
    %313 = vmatprep.subr.mxu0 0.0
    %314 = vmatpush2.msra.mxu0 %v221
    %315 = vmatprep.subr.mxu0 0.0
    %316 = vmatpush2.msra.mxu0 %v220
    %317 = vmatprep.subr.mxu0 0.0
    %318 = vmatpush2.msra.mxu0 %v219
    %319 = vmatprep.subr.mxu0 0.0
    %320 = vmatpush2.msra.mxu0 %v218
    %321 = vmatprep.mubr.f32.mxu0 %v200
    %322 = vmatmul.mubr.f32.gmra.mxu0 %v199
    %v323 = vpop.f32.mrf.mxu0
    %v324 = vadd.f32 %v255, %v323
    %v325 = vpop.f32.mrf.mxu0
    %326 = vdwg.mxu0
    %327 = vmatprep.subr.mxu0 0.0
    %328 = vmatpush1.msra.mxu0 %v249
    %329 = vmatprep.subr.mxu0 0.0
    %330 = vmatpush1.msra.mxu0 %v248
    %331 = vmatprep.subr.mxu0 0.0
    %332 = vmatpush1.msra.mxu0 %v247
    %333 = vmatprep.subr.mxu0 0.0
    %334 = vmatpush1.msra.mxu0 %v246
    %335 = vmatprep.subr.mxu0 0.0
    %336 = vmatpush1.msra.mxu0 %v245
    %337 = vmatprep.subr.mxu0 0.0
    %338 = vmatpush1.msra.mxu0 %v244
    %339 = vmatprep.subr.mxu0 0.0
    %340 = vmatpush1.msra.mxu0 %v243
    %341 = vmatprep.subr.mxu0 0.0
    %342 = vmatpush1.msra.mxu0 %v242
    %343 = vmatprep.subr.mxu0 0.0
    %344 = vmatpush1.msra.mxu0 %v241
    %345 = vmatprep.subr.mxu0 0.0
    %346 = vmatpush1.msra.mxu0 %v240
    %347 = vmatprep.subr.mxu0 0.0
    %348 = vmatpush1.msra.mxu0 %v239
    %349 = vmatprep.subr.mxu0 0.0
    %350 = vmatpush1.msra.mxu0 %v238
    %351 = vmatprep.subr.mxu0 0.0
    %352 = vmatpush1.msra.mxu0 %v237
    %353 = vmatprep.subr.mxu0 0.0
    %354 = vmatpush1.msra.mxu0 %v236
    %355 = vmatprep.subr.mxu0 0.0
    %356 = vmatpush1.msra.mxu0 %v235
    %357 = vmatprep.subr.mxu0 0.0
    %358 = vmatpush1.msra.mxu0 %v234
    %359 = vmatprep.subr.mxu0 0.0
    %360 = vmatpush2.msra.mxu0 0.0
    %361 = vmatprep.subr.mxu0 0.0
    %362 = vmatpush2.msra.mxu0 0.0
    %363 = vmatprep.subr.mxu0 0.0
    %364 = vmatpush2.msra.mxu0 0.0
    %365 = vmatprep.subr.mxu0 0.0
    %366 = vmatpush2.msra.mxu0 0.0
    %367 = vmatprep.subr.mxu0 0.0
    %368 = vmatpush2.msra.mxu0 0.0
    %369 = vmatprep.subr.mxu0 0.0
    %370 = vmatpush2.msra.mxu0 0.0
    %371 = vmatprep.subr.mxu0 0.0
    %372 = vmatpush2.msra.mxu0 0.0
    %373 = vmatprep.subr.mxu0 0.0
    %374 = vmatpush2.msra.mxu0 0.0
    %375 = vmatprep.subr.mxu0 0.0
    %376 = vmatpush2.msra.mxu0 0.0
    %377 = vmatprep.subr.mxu0 0.0
    %378 = vmatpush2.msra.mxu0 0.0
    %379 = vmatprep.subr.mxu0 0.0
    %380 = vmatpush2.msra.mxu0 0.0
    %381 = vmatprep.subr.mxu0 0.0
    %382 = vmatpush2.msra.mxu0 0.0
    %383 = vmatprep.subr.mxu0 0.0
    %384 = vmatpush2.msra.mxu0 0.0
    %385 = vmatprep.subr.mxu0 0.0
    %386 = vmatpush2.msra.mxu0 0.0
    %387 = vmatprep.subr.mxu0 0.0
    %388 = vmatpush2.msra.mxu0 0.0
    %389 = vmatprep.subr.mxu0 0.0
    %390 = vmatpush2.msra.mxu0 0.0
    %391 = vmatprep.mubr.f32.mxu0 0.0
    %392 = vmatmul.mubr.f32.gmra.mxu0 %v201
    %v393 = vpop.f32.mrf.mxu0
    %v394 = vadd.f32 %v324, %v393
    %v395 = vpop.f32.mrf.mxu0
    %396 = vdwg.mxu0
    %vm397 = vcmask 130048
    %398 = vst.msk [vmem:[#allocation2] sm:$0xff] %vm397, %v394
    // Predicated region
    $region22: #{tpu_custom_call.1} parent=1 // pred_check
      _
    $region23: #{tpu_custom_call.1} parent=1 // pred_check_branch
      %400 = sbr.rel (0) target = $region25
    $region24: #{tpu_custom_call.1} parent=1 // pred_region
      %s402 = ssub.s32 128, 128
      %403 = vsyncadd [#allocation3], %s402
      %s405 = sshll.u32 [#allocation2], 4
      %s406 = int_to_ptr.vmem [resolvable:$true] %s405
      %408 = dma.vmem_to_hbm [thread:$0]  %s406, 128, %s5, [#allocation3]
    $region25: #{tpu_custom_call.1} parent=1 // pred_fallthru
      _
    // Predicated region
    $region26: #{tpu_custom_call.1} parent=1 // pred_check
      _
    $region27: #{tpu_custom_call.1} parent=1 // pred_check_branch
      %410 = sbr.rel (0) target = $region29
    $region28: #{tpu_custom_call.1} parent=1 // pred_region
      %411 = dma.done [#allocation3], 128
    $region29: #{tpu_custom_call.1} parent=1 // pred_fallthru
      _
    %412 = vsyncpa [#allocation3], 1

</llo_original>
